<compile_context>
chip_gen: v7x
topology: tpu7x:2x2x1
jax: 0.10.0
libtpu: 0.0.40
codegen_flags: <defaults>
</compile_context>

<pallas_src>
import jax
import jax.numpy as jnp
import numpy as np
from jax.experimental import pallas as pl
from jax.experimental.pallas import tpu as pltpu

NEG_SLOPE = 0.01  # torch.nn.LeakyReLU default


def _leaky_relu(x):
    return jnp.where(x > 0, x, NEG_SLOPE * x)


def _round_up(x, m):
    return -(-x // m) * m


# ---------------------------------------------------------------------------
# Fused kernel: 3-layer MLP on a row tile (bf16 MXU inputs, f32 accumulation),
# then per-segment partial sums via a one-hot membership matmul, accumulated
# into the resident per-half output block.
# ---------------------------------------------------------------------------
def fused_encoder_kernel(starts_ref, ends_ref, x_ref,
                         w1_ref, b1_ref, w2_ref, b2_ref, w3_ref, b3_ref,
                         o_ref):
    c = pl.program_id(0)   # parallel half (2 TensorCores on v7x)
    i = pl.program_id(1)   # reduction step within this half

    @pl.when(i == 0)
    def _init():
        o_ref[...] = jnp.zeros_like(o_ref)

    # ---- fused MLP: bf16 MXU operands, f32 accumulation / elementwise ----
    x = x_ref[...].astype(jnp.bfloat16)
    h = jnp.dot(x, w1_ref[...], preferred_element_type=jnp.float32)
    h = _leaky_relu(h + b1_ref[...])
    h = jnp.dot(h.astype(jnp.bfloat16), w2_ref[...],
                preferred_element_type=jnp.float32)
    h = _leaky_relu(h + b2_ref[...])
    h = jnp.dot(h.astype(jnp.bfloat16), w3_ref[...],
                preferred_element_type=jnp.float32)
    h = h + b3_ref[...]                                   # [tile_m, D] f32

    # ---- fused segment sum: one-hot membership matmul (exact in f32) ----
    # Zero-padded rows have global index >= ptr[-1] and fall outside every
    # [start, end) interval, so they contribute nothing.
    tile_m = x_ref.shape[0]
    s_pad = o_ref.shape[1]
    row0 = (c * pl.num_programs(1) + i) * tile_m
    row_ids = row0 + jax.lax.broadcasted_iota(jnp.int32, (s_pad, tile_m), 1)
    member = ((row_ids >= starts_ref[...]) &
              (row_ids < ends_ref[...])).astype(jnp.float32)
    seg = jnp.dot(member, h, preferred_element_type=jnp.float32)
    o_ref[...] += seg[None, :, :]


# ---------------------------------------------------------------------------
# Wrapper
# ---------------------------------------------------------------------------
def global_encoder_forward(h_dag, params, obs_ptr=None, *, tile_m=8192):
    """h_dag: [N, D] float32 or bfloat16.  obs_ptr: int32 CSR pointer [num_obs+1] or None."""
    n, d = h_dag.shape
    w1, b1, w2, b2, w3, b3 = params
    h1, h2 = w1.shape[1], w2.shape[1]

    # bf16 MXU weights; biases (and all elementwise math) stay f32.
    w1b, w2b, w3b = (w.astype(jnp.bfloat16) for w in (w1, w2, w3))

    # Segment boundaries.  obs_ptr=None  ==  a single segment [0, N).
    if obs_ptr is None:
        ptr = jnp.array([0, n], dtype=jnp.int32)
    else:
        ptr = obs_ptr.astype(jnp.int32)
        try:                                  # sanity check when concrete
            p = np.asarray(obs_ptr)
        except Exception:
            p = None
        if p is not None:
            assert p[0] >= 0 and p[-1] <= n and np.all(np.diff(p) >= 0), \
                "obs_ptr must be a non-decreasing CSR pointer within [0, N]"
    num_segs = int(ptr.shape[0]) - 1
    s_pad = _round_up(max(num_segs, 1), 8)          # sublane-aligned accumulator

    # Padded segments are empty (start == end == n) so they stay zero.
    starts = (jnp.full((s_pad,), n, dtype=jnp.int32)
              .at[:num_segs].set(ptr[:-1]).reshape(s_pad, 1))
    ends = (jnp.full((s_pad,), n, dtype=jnp.int32)
            .at[:num_segs].set(ptr[1:]).reshape(s_pad, 1))

    # ---- tile sizing against the *padded* (8,128) VMEM layout -------------
    lane = 128
    x_bytes = jnp.dtype(h_dag.dtype).itemsize

    def vmem_estimate(tm):
        return (2 * tm * lane * x_bytes                 # double-buffered input tile
                + 2 * tm * lane * 4                     # live f32 MLP intermediates
                + s_pad * tm * 4                        # materialized membership matrix
                + 2 * _round_up(s_pad, 8) * lane * 4    # resident output block
                + (1 << 20))                            # weights/biases + headroom

    tile_m = max(8, int(min(tile_m, _round_up(n, 8))))
    tile_m = _round_up(tile_m, 8)
    VMEM_BUDGET = 24 << 20                 # conservative across v5e/v6e/v7x
    while vmem_estimate(tile_m) > VMEM_BUDGET and tile_m > 512:
        tile_m //= 2
    while s_pad * tile_m * 4 > (2 << 20) and tile_m > 512:
        tile_m //= 2                       # many-segment case: cap membership build
    tile_m = max(8, _round_up(tile_m, 8))

    num_tiles = pl.cdiv(n, tile_m)
    split = 2 if num_tiles >= 2 else 1     # 2-way core split (v7x megacore)
    tiles_per_half = pl.cdiv(num_tiles, split)
    n_pad = split * tiles_per_half * tile_m
    if n_pad != n:
        h_dag = jnp.pad(h_dag, ((0, n_pad - n), (0, 0)))

    grid = (split, tiles_per_half)

    flops = 2 * n * (d * h1 + h1 * h2 + h2 * d) + 2 * n * s_pad * d
    bytes_accessed = (n_pad * d * x_bytes
                      + (d * h1 + h1 * h2 + h2 * d) * 2
                      + (h1 + h2 + d) * 4
                      + split * s_pad * d * 4)
    cost = pl.CostEstimate(flops=int(flops), transcendentals=0,
                           bytes_accessed=int(bytes_accessed))

    vmem_limit = int(min(max(2 * vmem_estimate(tile_m), 32 << 20), 56 << 20))

    out = pl.pallas_call(
        fused_encoder_kernel,
        out_shape=jax.ShapeDtypeStruct((split, s_pad, d), jnp.float32),
        grid=grid,
        in_specs=[
            pl.BlockSpec((s_pad, 1), lambda c, i: (0, 0)),   # segment starts
            pl.BlockSpec((s_pad, 1), lambda c, i: (0, 0)),   # segment ends
            pl.BlockSpec((tile_m, d),
                         lambda c, i, T=tiles_per_half: (c * T + i, 0)),  # row tile
            pl.BlockSpec(w1b.shape, lambda c, i: (0, 0)),    # weights stay resident
            pl.BlockSpec(b1.shape, lambda c, i: (0, 0)),
            pl.BlockSpec(w2b.shape, lambda c, i: (0, 0)),
            pl.BlockSpec(b2.shape, lambda c, i: (0, 0)),
            pl.BlockSpec(w3b.shape, lambda c, i: (0, 0)),
            pl.BlockSpec(b3.shape, lambda c, i: (0, 0)),
        ],
        # Per-half output block is VMEM-resident across the inner reduction
        # axis and written back once per half.
        out_specs=pl.BlockSpec((1, s_pad, d), lambda c, i: (c, 0, 0)),
        compiler_params=pltpu.CompilerParams(
            dimension_semantics=("parallel", "arbitrary"),
            vmem_limit_bytes=vmem_limit),
        cost_estimate=cost,
    )(starts, ends, h_dag, w1b, b1, w2b, b2, w3b, b3)

    return out.sum(axis=0)[:num_segs]


# ---------------------------------------------------------------------------
# Deterministic parameter init (shapes per make_mlp(embed_dim, hid_dims=[32,16],
# output_dim=embed_dim)).  Weights stored as [in, out] so the kernel computes
# x @ W + b (== torch Linear's x @ W.T + b with weight [out, in]).
# ---------------------------------------------------------------------------
def init_params(key, embed_dim, hid_dims):
    dims = [embed_dim] + list(hid_dims) + [embed_dim]
    params = []
    for i in range(len(dims) - 1):
        key, kw, kb = jax.random.split(key, 3)
        bound = 1.0 / np.sqrt(dims[i])
        w = jax.random.uniform(kw, (dims[i], dims[i + 1]), jnp.float32, -bound, bound)
        b = jax.random.uniform(kb, (1, dims[i + 1]), jnp.float32, -bound, bound)
        params += [w, b]
    return tuple(params)


# ---------------------------------------------------------------------------
# Pure-JAX references.  match_bf16=True applies the same bf16 MXU-operand
# rounding the kernel uses (f32 accumulation / bias / LeakyReLU), so the
# comparison is tight; match_bf16=False is the plain f32 torch-equivalent.
# ---------------------------------------------------------------------------
def reference(h_dag, params, obs_ptr=None, *, match_bf16=False):
    w1, b1, w2, b2, w3, b3 = params
    c = (lambda a: a.astype(jnp.bfloat16)) if match_bf16 else (lambda a: a)
    h = _leaky_relu(jnp.dot(c(h_dag), c(w1), preferred_element_type=jnp.float32) + b1)
    h = _leaky_relu(jnp.dot(c(h), c(w2), preferred_element_type=jnp.float32) + b2)
    h = jnp.dot(c(h), c(w3), preferred_element_type=jnp.float32) + b3
    if obs_ptr is None:
        return h.sum(0, keepdims=True)
    ptr = np.asarray(obs_ptr)
    segs = [h[int(ptr[i]):int(ptr[i + 1])].sum(0) for i in range(ptr.shape[0] - 1)]
    return jnp.stack(segs)


if __name__ == "__main__":
    key = jax.random.PRNGKey(0)
    embed_dim = 16
    hid_dims = [32, 16]        # mlp_kwargs = dict(hid_dims=[32, 16], act_cls=LeakyReLU)
    num_nodes = 22             # deliberately not a multiple of 8 -> exercises padding

    key, kx = jax.random.split(key)
    h_dag = jax.random.normal(kx, (num_nodes, embed_dim), jnp.float32)
    params = init_params(key, embed_dim, hid_dims)

    # CSR pointer over 3 observations: rows [0,5), [5,11), [11,22)
    obs_ptr = jnp.array([0, 5, 11, 22], dtype=jnp.int32)
    ref_seg_bf16 = reference(h_dag, params, obs_ptr, match_bf16=True)
    ref_seg_f32 = reference(h_dag, params, obs_ptr, match_bf16=False)

    # Path 1: with obs_ptr (segment_csr sum), single tile / single half
    out_seg = jax.block_until_ready(global_encoder_forward(h_dag, params, obs_ptr))
    np.testing.assert_allclose(np.asarray(out_seg), np.asarray(ref_seg_bf16),
                               rtol=1e-3, atol=1e-3)
    np.testing.assert_allclose(np.asarray(out_seg), np.asarray(ref_seg_f32),
                               rtol=5e-2, atol=5e-2)

    # Path 1b: tiny tile forces a multi-step grid and the 2-way parallel split
    # -> tests cross-tile accumulation, row padding/masking, and slab summing.
    out_seg2 = jax.block_until_ready(
        global_encoder_forward(h_dag, params, obs_ptr, tile_m=8))
    np.testing.assert_allclose(np.asarray(out_seg2), np.asarray(ref_seg_bf16),
                               rtol=1e-3, atol=1e-3)

    # Path 2: obs_ptr=None (global sum, keepdim)
    out_glob = jax.block_until_ready(global_encoder_forward(h_dag, params, None))
    ref_glob = reference(h_dag, params, None, match_bf16=True)
    np.testing.assert_allclose(np.asarray(out_glob), np.asarray(ref_glob),
                               rtol=1e-3, atol=1e-3)
    assert out_glob.shape == (1, embed_dim)

    # Path 3: medium size, several segments, several tiles per half
    n2 = 600
    key, kx2 = jax.random.split(key)
    h2 = jax.random.normal(kx2, (n2, embed_dim), jnp.float32)
    ptr2 = jnp.array([0, 37, 150, 151, 400, 600], dtype=jnp.int32)
    out2 = jax.block_until_ready(
        global_encoder_forward(h2, params, ptr2, tile_m=128))
    ref2 = reference(h2, params, ptr2, match_bf16=True)
    np.testing.assert_allclose(np.asarray(out2), np.asarray(ref2),
                               rtol=1e-3, atol=2e-3)

    print("KERNEL_OK")
</pallas_src>

<mosaic_0001>
module attributes {stable_mosaic.version = 11 : i64} {
  func.func @fused_encoder_kernel(%arg0: i32, %arg1: i32, %arg2: memref<8x1xi32, #tpu.memory_space<vmem>>, %arg3: memref<8x1xi32, #tpu.memory_space<vmem>>, %arg4: memref<24x16xf32, #tpu.memory_space<vmem>>, %arg5: memref<16x32xbf16, #tpu.memory_space<vmem>>, %arg6: memref<1x32xf32, #tpu.memory_space<vmem>>, %arg7: memref<32x16xbf16, #tpu.memory_space<vmem>>, %arg8: memref<1x16xf32, #tpu.memory_space<vmem>>, %arg9: memref<16x16xbf16, #tpu.memory_space<vmem>>, %arg10: memref<1x16xf32, #tpu.memory_space<vmem>>, %arg11: memref<1x8x16xf32, #tpu.memory_space<vmem>>) attributes {dimension_semantics = [#tpu.dimension_semantics<parallel>, #tpu.dimension_semantics<arbitrary>], iteration_bounds = array<i64: 1, 1>, scalar_prefetch = 0 : i64, scratch_operands = 0 : i64, tpu.core_type = #tpu.core_type<tc>, window_params = [{pipeline_mode = #tpu.pipeline_mode<synchronous>, transform_indices = @transform_0, window_bounds = array<i64: 8, 1>}, {pipeline_mode = #tpu.pipeline_mode<synchronous>, transform_indices = @transform_1, window_bounds = array<i64: 8, 1>}, {transform_indices = @transform_2, window_bounds = array<i64: 24, 16>}, {pipeline_mode = #tpu.pipeline_mode<synchronous>, transform_indices = @transform_3, window_bounds = array<i64: 16, 32>}, {pipeline_mode = #tpu.pipeline_mode<synchronous>, transform_indices = @transform_4, window_bounds = array<i64: 1, 32>}, {pipeline_mode = #tpu.pipeline_mode<synchronous>, transform_indices = @transform_5, window_bounds = array<i64: 32, 16>}, {pipeline_mode = #tpu.pipeline_mode<synchronous>, transform_indices = @transform_6, window_bounds = array<i64: 1, 16>}, {pipeline_mode = #tpu.pipeline_mode<synchronous>, transform_indices = @transform_7, window_bounds = array<i64: 16, 16>}, {pipeline_mode = #tpu.pipeline_mode<synchronous>, transform_indices = @transform_8, window_bounds = array<i64: 1, 16>}, {transform_indices = @transform_9, window_bounds = array<i64: 1, 8, 16>}]} {
    %c0_i32 = arith.constant 0 : i32
    %0 = arith.cmpi eq, %arg1, %c0_i32 : i32
    %1 = arith.extui %0 : i1 to i32
    %c0_i32_0 = arith.constant 0 : i32
    %2 = arith.cmpi ne, %1, %c0_i32_0 : i32
    scf.if %2 {
      %cst_31 = arith.constant 0.000000e+00 : f32
      %52 = vector.broadcast %cst_31 : f32 to vector<1x8x16xf32>
      %c0_32 = arith.constant 0 : index
      %c0_33 = arith.constant 0 : index
      %c0_34 = arith.constant 0 : index
      %53 = vector.load %arg11[%c0_32, %c0_33, %c0_34] : memref<1x8x16xf32, #tpu.memory_space<vmem>>, vector<1x8x16xf32>
      tpu.vector_store %arg11[%c0_32, %c0_33, %c0_34], %52 {strides = array<i32>} : memref<1x8x16xf32, #tpu.memory_space<vmem>>, vector<1x8x16xf32>,
    } else {
    }
    %c0 = arith.constant 0 : index
    %c0_1 = arith.constant 0 : index
    %3 = vector.load %arg4[%c0, %c0_1] : memref<24x16xf32, #tpu.memory_space<vmem>>, vector<24x16xf32>
    %4 = arith.truncf %3 : vector<24x16xf32> to vector<24x16xbf16>
    %c0_2 = arith.constant 0 : index
    %c0_3 = arith.constant 0 : index
    %5 = vector.load %arg5[%c0_2, %c0_3] : memref<16x32xbf16, #tpu.memory_space<vmem>>, vector<16x32xbf16>
    %cst = arith.constant dense<0.000000e+00> : vector<24x32xf32>
    %6 = tpu.matmul %4, %5, %cst {dimension_numbers = #tpu.dot_dimension_numbers<[1], [0], [0], [1], [0, 0, 1, 1], [], []>} : vector<24x16xbf16>, vector<16x32xbf16>, vector<24x32xf32> -> vector<24x32xf32>
    %c0_4 = arith.constant 0 : index
    %c0_5 = arith.constant 0 : index
    %7 = vector.load %arg6[%c0_4, %c0_5] : memref<1x32xf32, #tpu.memory_space<vmem>>, vector<1x32xf32>
    %8 = vector.broadcast %7 : vector<1x32xf32> to vector<24x32xf32>
    %9 = arith.addf %6, %8 : vector<24x32xf32>
    %cst_6 = arith.constant 0.000000e+00 : f32
    %10 = vector.broadcast %cst_6 : f32 to vector<24x32xf32>
    %11 = arith.cmpf ogt, %9, %10 : vector<24x32xf32>
    %cst_7 = arith.constant 0.00999999977 : f32
    %12 = vector.broadcast %cst_7 : f32 to vector<24x32xf32>
    %13 = arith.mulf %12, %9 : vector<24x32xf32>
    %14 = arith.select %11, %9, %13 : vector<24x32xi1>, vector<24x32xf32>
    %15 = arith.truncf %14 : vector<24x32xf32> to vector<24x32xbf16>
    %c0_8 = arith.constant 0 : index
    %c0_9 = arith.constant 0 : index
    %16 = vector.load %arg7[%c0_8, %c0_9] : memref<32x16xbf16, #tpu.memory_space<vmem>>, vector<32x16xbf16>
    %cst_10 = arith.constant dense<0.000000e+00> : vector<24x16xf32>
    %17 = tpu.matmul %15, %16, %cst_10 {dimension_numbers = #tpu.dot_dimension_numbers<[1], [0], [0], [1], [0, 0, 1, 1], [], []>} : vector<24x32xbf16>, vector<32x16xbf16>, vector<24x16xf32> -> vector<24x16xf32>
    %c0_11 = arith.constant 0 : index
    %c0_12 = arith.constant 0 : index
    %18 = vector.load %arg8[%c0_11, %c0_12] : memref<1x16xf32, #tpu.memory_space<vmem>>, vector<1x16xf32>
    %19 = vector.broadcast %18 : vector<1x16xf32> to vector<24x16xf32>
    %20 = arith.addf %17, %19 : vector<24x16xf32>
    %cst_13 = arith.constant 0.000000e+00 : f32
    %21 = vector.broadcast %cst_13 : f32 to vector<24x16xf32>
    %22 = arith.cmpf ogt, %20, %21 : vector<24x16xf32>
    %cst_14 = arith.constant 0.00999999977 : f32
    %23 = vector.broadcast %cst_14 : f32 to vector<24x16xf32>
    %24 = arith.mulf %23, %20 : vector<24x16xf32>
    %25 = arith.select %22, %20, %24 : vector<24x16xi1>, vector<24x16xf32>
    %26 = arith.truncf %25 : vector<24x16xf32> to vector<24x16xbf16>
    %c0_15 = arith.constant 0 : index
    %c0_16 = arith.constant 0 : index
    %27 = vector.load %arg9[%c0_15, %c0_16] : memref<16x16xbf16, #tpu.memory_space<vmem>>, vector<16x16xbf16>
    %cst_17 = arith.constant dense<0.000000e+00> : vector<24x16xf32>
    %28 = tpu.matmul %26, %27, %cst_17 {dimension_numbers = #tpu.dot_dimension_numbers<[1], [0], [0], [1], [0, 0, 1, 1], [], []>} : vector<24x16xbf16>, vector<16x16xbf16>, vector<24x16xf32> -> vector<24x16xf32>
    %c0_18 = arith.constant 0 : index
    %c0_19 = arith.constant 0 : index
    %29 = vector.load %arg10[%c0_18, %c0_19] : memref<1x16xf32, #tpu.memory_space<vmem>>, vector<1x16xf32>
    %30 = vector.broadcast %29 : vector<1x16xf32> to vector<24x16xf32>
    %31 = arith.addf %28, %30 : vector<24x16xf32>
    %c1_i32 = arith.constant 1 : i32
    %32 = arith.muli %arg0, %c1_i32 : i32
    %33 = arith.addi %32, %arg1 : i32
    %c24_i32 = arith.constant 24 : i32
    %34 = arith.muli %33, %c24_i32 : i32
    %35 = tpu.iota {dimensions = array<i32: 1>} : vector<8x24xi32>
    %36 = vector.broadcast %34 : i32 to vector<8x24xi32>
    %37 = arith.addi %36, %35 : vector<8x24xi32>
    %c0_20 = arith.constant 0 : index
    %c0_21 = arith.constant 0 : index
    %38 = vector.load %arg2[%c0_20, %c0_21] : memref<8x1xi32, #tpu.memory_space<vmem>>, vector<8x1xi32>
    %39 = vector.broadcast %38 : vector<8x1xi32> to vector<8x24xi32>
    %40 = arith.cmpi sge, %37, %39 : vector<8x24xi32>
    %c0_22 = arith.constant 0 : index
    %c0_23 = arith.constant 0 : index
    %41 = vector.load %arg3[%c0_22, %c0_23] : memref<8x1xi32, #tpu.memory_space<vmem>>, vector<8x1xi32>
    %42 = vector.broadcast %41 : vector<8x1xi32> to vector<8x24xi32>
    %43 = arith.cmpi slt, %37, %42 : vector<8x24xi32>
    %44 = arith.andi %40, %43 : vector<8x24xi1>
    %45 = arith.extui %44 : vector<8x24xi1> to vector<8x24xi32>
    %46 = arith.sitofp %45 : vector<8x24xi32> to vector<8x24xf32>
    %cst_24 = arith.constant dense<0.000000e+00> : vector<8x16xf32>
    %47 = tpu.matmul %46, %31, %cst_24 {dimension_numbers = #tpu.dot_dimension_numbers<[1], [0], [0], [1], [0, 0, 1, 1], [], []>} : vector<8x24xf32>, vector<24x16xf32>, vector<8x16xf32> -> vector<8x16xf32>
    %c0_25 = arith.constant 0 : index
    %c0_26 = arith.constant 0 : index
    %c0_27 = arith.constant 0 : index
    %48 = vector.load %arg11[%c0_25, %c0_26, %c0_27] : memref<1x8x16xf32, #tpu.memory_space<vmem>>, vector<1x8x16xf32>
    %49 = vector.shape_cast %47 : vector<8x16xf32> to vector<1x8x16xf32>
    %50 = arith.addf %48, %49 : vector<1x8x16xf32>
    %c0_28 = arith.constant 0 : index
    %c0_29 = arith.constant 0 : index
    %c0_30 = arith.constant 0 : index
    %51 = vector.load %arg11[%c0_28, %c0_29, %c0_30] : memref<1x8x16xf32, #tpu.memory_space<vmem>>, vector<1x8x16xf32>
    tpu.vector_store %arg11[%c0_28, %c0_29, %c0_30], %50 {strides = array<i32>} : memref<1x8x16xf32, #tpu.memory_space<vmem>>, vector<1x8x16xf32>,
    return
  }
  func.func @transform_0(%arg0: i32, %arg1: i32) -> (i32, i32) {
    %c0_i32 = arith.constant 0 : i32
    %c0_i32_0 = arith.constant 0 : i32
    %c0_i32_1 = arith.constant 0 : i32
    return %c0_i32, %c0_i32_0 : i32, i32
  }
  func.func @transform_1(%arg0: i32, %arg1: i32) -> (i32, i32) {
    %c0_i32 = arith.constant 0 : i32
    %c0_i32_0 = arith.constant 0 : i32
    %c0_i32_1 = arith.constant 0 : i32
    return %c0_i32, %c0_i32_0 : i32, i32
  }
  func.func @transform_2(%arg0: i32, %arg1: i32) -> (i32, i32) {
    %c1_i32 = arith.constant 1 : i32
    %0 = arith.muli %arg0, %c1_i32 : i32
    %1 = arith.addi %0, %arg1 : i32
    %c0_i32 = arith.constant 0 : i32
    %c0_i32_0 = arith.constant 0 : i32
    return %1, %c0_i32 : i32, i32
  }
  func.func @transform_3(%arg0: i32, %arg1: i32) -> (i32, i32) {
    %c0_i32 = arith.constant 0 : i32
    %c0_i32_0 = arith.constant 0 : i32
    %c0_i32_1 = arith.constant 0 : i32
    return %c0_i32, %c0_i32_0 : i32, i32
  }
  func.func @transform_4(%arg0: i32, %arg1: i32) -> (i32, i32) {
    %c0_i32 = arith.constant 0 : i32
    %c0_i32_0 = arith.constant 0 : i32
    %c0_i32_1 = arith.constant 0 : i32
    return %c0_i32, %c0_i32_0 : i32, i32
  }
  func.func @transform_5(%arg0: i32, %arg1: i32) -> (i32, i32) {
    %c0_i32 = arith.constant 0 : i32
    %c0_i32_0 = arith.constant 0 : i32
    %c0_i32_1 = arith.constant 0 : i32
    return %c0_i32, %c0_i32_0 : i32, i32
  }
  func.func @transform_6(%arg0: i32, %arg1: i32) -> (i32, i32) {
    %c0_i32 = arith.constant 0 : i32
    %c0_i32_0 = arith.constant 0 : i32
    %c0_i32_1 = arith.constant 0 : i32
    return %c0_i32, %c0_i32_0 : i32, i32
  }
  func.func @transform_7(%arg0: i32, %arg1: i32) -> (i32, i32) {
    %c0_i32 = arith.constant 0 : i32
    %c0_i32_0 = arith.constant 0 : i32
    %c0_i32_1 = arith.constant 0 : i32
    return %c0_i32, %c0_i32_0 : i32, i32
  }
  func.func @transform_8(%arg0: i32, %arg1: i32) -> (i32, i32) {
    %c0_i32 = arith.constant 0 : i32
    %c0_i32_0 = arith.constant 0 : i32
    %c0_i32_1 = arith.constant 0 : i32
    return %c0_i32, %c0_i32_0 : i32, i32
  }
  func.func @transform_9(%arg0: i32, %arg1: i32) -> (i32, i32, i32) {
    %c0_i32 = arith.constant 0 : i32
    %c0_i32_0 = arith.constant 0 : i32
    %c0_i32_1 = arith.constant 0 : i32
    return %arg0, %c0_i32, %c0_i32_0 : i32, i32, i32
  }
}

</mosaic_0001>

<llo_original>
// kernel: tpu_custom_call.1
$region0: #{tpu_custom_call.1}
  #allocation0 [shape = 'u32[]', space=smem, size = 0x4, offset = 0x4, fixed_abs, tag = 'smem constant byte address 0x4 - core index']
  #allocation1 [shape = 'u32[144,128]{1,0:T(1,128)}', space=vmem, size = 0x12000, scoped, tag = 'internal scratch']
  %s0 = inlined_call_operand.vmem [shape: s32[8,1], index: 0, kind: input, shape index: {}]
  %s1 = inlined_call_operand.vmem [shape: s32[8,1], index: 1, kind: input, shape index: {}]
  %s2 = inlined_call_operand.vmem [shape: f32[24,16], index: 2, kind: input, shape index: {}]
  %s3 = inlined_call_operand.vmem [shape: bf16[16,32], index: 3, kind: input, shape index: {}]
  %s4 = inlined_call_operand.vmem [shape: f32[1,32], index: 4, kind: input, shape index: {}]
  %s5 = inlined_call_operand.vmem [shape: bf16[32,16], index: 5, kind: input, shape index: {}]
  %s6 = inlined_call_operand.vmem [shape: f32[1,16], index: 6, kind: input, shape index: {}]
  %s7 = inlined_call_operand.vmem [shape: bf16[16,16], index: 7, kind: input, shape index: {}]
  %s8 = inlined_call_operand.vmem [shape: f32[1,16], index: 8, kind: input, shape index: {}]
  %s9 = inlined_call_operand.hbm [shape: f32[1,8,16], index: 9, kind: output, shape index: {}]
  %s10 = sld [smem:[#allocation0]]
  $region50: #{tpu_custom_call.1} parent=0
    _
  %s12 = ssub.s32 1, %s10
  %s13 = scalar_select 0, %s12, %s10
  $region1: #{tpu_custom_call.1} parent=0
    #allocation2 [shape = 'u8[4096]{0}', space=vmem, size = 0x1000, scoped, tag = 'output window, operand 0, single buffered']
    #allocation3 [shape = 's32[1]{0}', space=sflag, size = 0x4, scoped, tag = 'scoped memory for tpu_custom_call.1']
    %14 = vsyncpa [#allocation3], 0
    // Predicated region
    $region2: #{tpu_custom_call.1} parent=1 // pred_check
      _
    $region3: #{tpu_custom_call.1} parent=1 // pred_check_branch
      %16 = sbr.rel (0) target = $region5
    $region4: #{tpu_custom_call.1} parent=1 // pred_region
      _
    $region5: #{tpu_custom_call.1} parent=1 // pred_fallthru
      _
    // Predicated region
    $region6: #{tpu_custom_call.1} parent=1 // pred_check
      _
    $region7: #{tpu_custom_call.1} parent=1 // pred_check_branch
      %18 = sbr.rel (0) target = $region9
    $region8: #{tpu_custom_call.1} parent=1 // pred_region
      _
    $region9: #{tpu_custom_call.1} parent=1 // pred_fallthru
      _
    // Predicated region
    $region10: #{tpu_custom_call.1} parent=1 // pred_check
      _
    $region11: #{tpu_custom_call.1} parent=1 // pred_check_branch
      %20 = sbr.rel (0) target = $region13
    $region12: #{tpu_custom_call.1} parent=1 // pred_region
      %s21 = sadd.s32 0, 0
      %s22 = smul.u32 3, %s21
      %p23 = scmp.lt.s32.totalorder %s22, 2
      %s24 = scalar_select %p23, %s22, 2
      %s25 = smul.addr %s24, 8
      %s26 = scalar_lea.vmem %s2, %s25
      %s27 = sadd.s32 0, 0
      %s28 = smul.u32 3, %s27
    $region13: #{tpu_custom_call.1} parent=1 // pred_fallthru
      _
    // Predicated region
    $region14: #{tpu_custom_call.1} parent=1 // pred_check
      _
    $region15: #{tpu_custom_call.1} parent=1 // pred_check_branch
      %30 = sbr.rel (0) target = $region17
    $region16: #{tpu_custom_call.1} parent=1 // pred_region
      _
    $region17: #{tpu_custom_call.1} parent=1 // pred_fallthru
      _
    // Predicated region
    $region18: #{tpu_custom_call.1} parent=1 // pred_check
      _
    $region19: #{tpu_custom_call.1} parent=1 // pred_check_branch
      %32 = sbr.rel (0) target = $region21
    $region20: #{tpu_custom_call.1} parent=1 // pred_region
      _
    $region21: #{tpu_custom_call.1} parent=1 // pred_fallthru
      _
    // Predicated region
    $region22: #{tpu_custom_call.1} parent=1 // pred_check
      _
    $region23: #{tpu_custom_call.1} parent=1 // pred_check_branch
      %34 = sbr.rel (0) target = $region25
    $region24: #{tpu_custom_call.1} parent=1 // pred_region
      _
    $region25: #{tpu_custom_call.1} parent=1 // pred_fallthru
      _
    // Predicated region
    $region26: #{tpu_custom_call.1} parent=1 // pred_check
      _
    $region27: #{tpu_custom_call.1} parent=1 // pred_check_branch
      %36 = sbr.rel (0) target = $region29
    $region28: #{tpu_custom_call.1} parent=1 // pred_region
      _
    $region29: #{tpu_custom_call.1} parent=1 // pred_fallthru
      _
    // Predicated region
    $region30: #{tpu_custom_call.1} parent=1 // pred_check
      _
    $region31: #{tpu_custom_call.1} parent=1 // pred_check_branch
      %38 = sbr.rel (0) target = $region33
    $region32: #{tpu_custom_call.1} parent=1 // pred_region
      _
    $region33: #{tpu_custom_call.1} parent=1 // pred_fallthru
      _
    // Predicated region
    $region34: #{tpu_custom_call.1} parent=1 // pred_check
      _
    $region35: #{tpu_custom_call.1} parent=1 // pred_check_branch
      %40 = sbr.rel (0) target = $region37
    $region36: #{tpu_custom_call.1} parent=1 // pred_region
      _
    $region37: #{tpu_custom_call.1} parent=1 // pred_fallthru
      _
    %s41 = sadd.s32 0, 0
    %s42 = smul.u32 3, %s41
    %p43 = scmp.lt.s32.totalorder %s42, 2
    %s44 = scalar_select %p43, %s42, 2
    %s45 = smul.addr %s44, 8
    %s46 = scalar_lea.vmem %s2, %s45
    %s47 = sadd.s32 0, 0
    %s48 = smul.u32 3, %s47
    %p49 = scmp.lt.s32.totalorder %s48, 2
    %s50 = scalar_select %p49, %s48, 2
    %s51 = smul.addr %s50, 8
    %s52 = scalar_lea.vmem %s2, %s51
    %s53 = sadd.s32 0, 0
    %s54 = smul.u32 3, %s53
    %p56 = scmp.eq.s32.totalorder 0, 0
    // Predicated region
    $region38: #{tpu_custom_call.1} parent=1 // pred_check
      %p57 = pneg %p56
    $region39: #{tpu_custom_call.1} parent=1 // pred_check_branch
      %59 = sbr.rel (%p57) target = $region41
    $region40: #{tpu_custom_call.1} parent=1 // pred_region
      %vm60 = vcmask 130048
      %61 = vst.msk [vmem:[#allocation2] sm:$0xff] %vm60, 0.0
    $region41: #{tpu_custom_call.1} parent=1 // pred_fallthru
      _
    %v62 = vld [vmem:[%s52] sm:$0xff]
    %v63 = vld [vmem:[%s52 + $0x8] sm:$0xff]
    %v64 = vld [vmem:[%s52 + $0x10] sm:$0xff]
    %v65 = vpack.c.bf16 %v63, %v62
    %v66 = vpack.c.bf16 %v64, %v64
    %v67 = vld [vmem:[%s3] sm:$0xf]
    %v68 = vld [vmem:[%s3 + $0x4] sm:$0xf]
    %v69 = vld [vmem:[%s4] sm:$0x1]
    %v71 = vlaneseq
    %v72 = vshrl.u32 %v71, 7
    %v73 = vsub.s32 0, %v72
    %v74 = vrot.slane %v69, %v73
    %v78 = vunpack.c.l.b16 %v67
    %v79 = vunpack.c.l.b16 %v68
    %v80 = vpack.c.b16 %v79, %v78
    %vm82 = vcmask 130048
    %v84 = vsel %vm82, %v65, 0
    %v87 = vsel %vm82, %v66, 0
    %89 = vmatprep.subr.bf16.mxu0 0
    %90 = vmatpush1.bf16.msra.mxu0 %v80
    %91 = vmatprep.subr.bf16.mxu0 0
    %92 = vmatpush1.bf16.msra.mxu0 0
    %93 = vmatprep.subr.bf16.mxu0 0
    %94 = vmatpush1.bf16.msra.mxu0 0
    %95 = vmatprep.subr.bf16.mxu0 0
    %96 = vmatpush1.bf16.msra.mxu0 0
    %97 = vmatprep.subr.bf16.mxu0 0
    %98 = vmatpush1.bf16.msra.mxu0 0
    %99 = vmatprep.subr.bf16.mxu0 0
    %100 = vmatpush1.bf16.msra.mxu0 0
    %101 = vmatprep.subr.bf16.mxu0 0
    %102 = vmatpush1.bf16.msra.mxu0 0
    %103 = vmatprep.subr.bf16.mxu0 0
    %104 = vmatpush1.bf16.msra.mxu0 0
    %105 = vmatprep.subr.bf16.mxu0 0
    %106 = vmatpush1.bf16.msra.mxu0 0
    %107 = vmatprep.subr.bf16.mxu0 0
    %108 = vmatpush1.bf16.msra.mxu0 0
    %109 = vmatprep.subr.bf16.mxu0 0
    %110 = vmatpush1.bf16.msra.mxu0 0
    %111 = vmatprep.subr.bf16.mxu0 0
    %112 = vmatpush1.bf16.msra.mxu0 0
    %113 = vmatprep.subr.bf16.mxu0 0
    %114 = vmatpush1.bf16.msra.mxu0 0
    %115 = vmatprep.subr.bf16.mxu0 0
    %116 = vmatpush1.bf16.msra.mxu0 0
    %117 = vmatprep.subr.bf16.mxu0 0
    %118 = vmatpush1.bf16.msra.mxu0 0
    %119 = vmatprep.subr.bf16.mxu0 0
    %120 = vmatpush1.bf16.msra.mxu0 0
    %121 = vmatprep.mubr.bf16.mxu0 0
    %122 = vmatmul.mubr.bf16.gmra.mrb[0].mxu0 %v84
    %v123 = vpop.f32.mrb[0].mxu0
    %v124 = vadd.f32 %v74, %v123
    %v125 = vpop.f32.mrb[0].mxu0
    %v126 = vpop.f32.mrb[0].mxu0
    %v127 = vadd.f32 %v74, %v126
    %v128 = vpop.f32.mrb[0].mxu0
    %129 = vmatprep.mubr.bf16.mxu0 0
    %130 = vmatmul.mubr.bf16.gmra.mrb[0].mxu0 %v87
    %v131 = vpop.f32.mrb[0].mxu0
    %v132 = vadd.f32 %v74, %v131
    %v133 = vpop.f32.mrb[0].mxu0
    %v134 = vpop.f32.mrb[0].mxu0
    %v135 = vpop.f32.mrb[0].mxu0
    %136 = vdwg.mxu0
    %vm137 = vcmp.gt.f32.partialorder %v124, 0.0
    %vm138 = vcmp.gt.f32.partialorder %v127, 0.0
    %vm139 = vcmp.gt.f32.partialorder %v132, 0.0
    %v140 = vmul.f32 %v124, 0.01
    %v141 = vmul.f32 %v127, 0.01
    %v142 = vmul.f32 %v132, 0.01
    %v143 = vsel %vm137, %v124, %v140
    %v144 = vsel %vm138, %v127, %v141
    %v145 = vsel %vm139, %v132, %v142
    %v146 = vpack.c.bf16 %v144, %v143
    %v147 = vpack.c.bf16 %v145, %v145
    %v148 = vld [vmem:[%s5] sm:$0xf]
    %v149 = vld [vmem:[%s5 + $0x4] sm:$0xf]
    %v150 = vld [vmem:[%s5 + $0x8] sm:$0xf]
    %v151 = vld [vmem:[%s5 + $0xc] sm:$0xf]
    %v152 = vld [vmem:[%s6] sm:$0x1]
    %v154 = vlaneseq
    %v155 = vshrl.u32 %v154, 7
    %v156 = vsub.s32 0, %v155
    %v157 = vrot.slane %v152, %v156
    %v163 = vunpack.c.l.b16 %v148
    %v164 = vunpack.c.l.b16 %v149
    %v165 = vunpack.c.l.b16 %v150
    %v166 = vunpack.c.l.b16 %v151
    %v167 = vpack.c.b16 %v164, %v163
    %v168 = vpack.c.b16 %v166, %v165
    %vm171 = vcmask 261120
    %v173 = vsel %vm171, %v146, 0
    %v176 = vsel %vm171, %v147, 0
    %178 = vmatprep.subr.bf16.mxu0 0
    %179 = vmatpush1.bf16.msra.mxu0 %v167
    %180 = vmatprep.subr.bf16.mxu0 0
    %181 = vmatpush1.bf16.msra.mxu0 %v168
    %182 = vmatprep.subr.bf16.mxu0 0
    %183 = vmatpush1.bf16.msra.mxu0 0
    %184 = vmatprep.subr.bf16.mxu0 0
    %185 = vmatpush1.bf16.msra.mxu0 0
    %186 = vmatprep.subr.bf16.mxu0 0
    %187 = vmatpush1.bf16.msra.mxu0 0
    %188 = vmatprep.subr.bf16.mxu0 0
    %189 = vmatpush1.bf16.msra.mxu0 0
    %190 = vmatprep.subr.bf16.mxu0 0
    %191 = vmatpush1.bf16.msra.mxu0 0
    %192 = vmatprep.subr.bf16.mxu0 0
    %193 = vmatpush1.bf16.msra.mxu0 0
    %194 = vmatprep.subr.bf16.mxu0 0
    %195 = vmatpush1.bf16.msra.mxu0 0
    %196 = vmatprep.subr.bf16.mxu0 0
    %197 = vmatpush1.bf16.msra.mxu0 0
    %198 = vmatprep.subr.bf16.mxu0 0
    %199 = vmatpush1.bf16.msra.mxu0 0
    %200 = vmatprep.subr.bf16.mxu0 0
    %201 = vmatpush1.bf16.msra.mxu0 0
    %202 = vmatprep.subr.bf16.mxu0 0
    %203 = vmatpush1.bf16.msra.mxu0 0
    %204 = vmatprep.subr.bf16.mxu0 0
    %205 = vmatpush1.bf16.msra.mxu0 0
    %206 = vmatprep.subr.bf16.mxu0 0
    %207 = vmatpush1.bf16.msra.mxu0 0
    %208 = vmatprep.subr.bf16.mxu0 0
    %209 = vmatpush1.bf16.msra.mxu0 0
    %210 = vmatprep.mubr.bf16.mxu0 0
    %211 = vmatmul.mubr.bf16.gmra.mrb[0].mxu0 %v173
    %v212 = vpop.f32.mrb[0].mxu0
    %v213 = vadd.f32 %v157, %v212
    %v214 = vpop.f32.mrb[0].mxu0
    %v215 = vpop.f32.mrb[0].mxu0
    %v216 = vadd.f32 %v157, %v215
    %v217 = vpop.f32.mrb[0].mxu0
    %218 = vmatprep.mubr.bf16.mxu0 0
    %219 = vmatmul.mubr.bf16.gmra.mrb[0].mxu0 %v176
    %v220 = vpop.f32.mrb[0].mxu0
    %v221 = vadd.f32 %v157, %v220
    %v222 = vpop.f32.mrb[0].mxu0
    %v223 = vpop.f32.mrb[0].mxu0
    %v224 = vpop.f32.mrb[0].mxu0
    %225 = vdwg.mxu0
    %vm226 = vcmp.gt.f32.partialorder %v213, 0.0
    %vm227 = vcmp.gt.f32.partialorder %v216, 0.0
    %vm228 = vcmp.gt.f32.partialorder %v221, 0.0
    %v229 = vmul.f32 %v213, 0.01
    %v230 = vmul.f32 %v216, 0.01
    %v231 = vmul.f32 %v221, 0.01
    %v232 = vsel %vm226, %v213, %v229
    %v233 = vsel %vm227, %v216, %v230
    %v234 = vsel %vm228, %v221, %v231
    %v235 = vpack.c.bf16 %v233, %v232
    %v236 = vpack.c.bf16 %v234, %v234
    %v237 = vld [vmem:[%s7] sm:$0xf]
    %v238 = vld [vmem:[%s7 + $0x4] sm:$0xf]
    %v239 = vld [vmem:[%s8] sm:$0x1]
    %v241 = vlaneseq
    %v242 = vshrl.u32 %v241, 7
    %v243 = vsub.s32 0, %v242
    %v244 = vrot.slane %v239, %v243
    %v248 = vunpack.c.l.b16 %v237
    %v249 = vunpack.c.l.b16 %v238
    %v250 = vpack.c.b16 %v249, %v248
    %v253 = vsel %vm82, %v235, 0
    %v256 = vsel %vm82, %v236, 0
    %258 = vmatprep.subr.bf16.mxu0 0
    %259 = vmatpush1.bf16.msra.mxu0 %v250
    %260 = vmatprep.subr.bf16.mxu0 0
    %261 = vmatpush1.bf16.msra.mxu0 0
    %262 = vmatprep.subr.bf16.mxu0 0
    %263 = vmatpush1.bf16.msra.mxu0 0
    %264 = vmatprep.subr.bf16.mxu0 0
    %265 = vmatpush1.bf16.msra.mxu0 0
    %266 = vmatprep.subr.bf16.mxu0 0
    %267 = vmatpush1.bf16.msra.mxu0 0
    %268 = vmatprep.subr.bf16.mxu0 0
    %269 = vmatpush1.bf16.msra.mxu0 0
    %270 = vmatprep.subr.bf16.mxu0 0
    %271 = vmatpush1.bf16.msra.mxu0 0
    %272 = vmatprep.subr.bf16.mxu0 0
    %273 = vmatpush1.bf16.msra.mxu0 0
    %274 = vmatprep.subr.bf16.mxu0 0
    %275 = vmatpush1.bf16.msra.mxu0 0
    %276 = vmatprep.subr.bf16.mxu0 0
    %277 = vmatpush1.bf16.msra.mxu0 0
    %278 = vmatprep.subr.bf16.mxu0 0
    %279 = vmatpush1.bf16.msra.mxu0 0
    %280 = vmatprep.subr.bf16.mxu0 0
    %281 = vmatpush1.bf16.msra.mxu0 0
    %282 = vmatprep.subr.bf16.mxu0 0
    %283 = vmatpush1.bf16.msra.mxu0 0
    %284 = vmatprep.subr.bf16.mxu0 0
    %285 = vmatpush1.bf16.msra.mxu0 0
    %286 = vmatprep.subr.bf16.mxu0 0
    %287 = vmatpush1.bf16.msra.mxu0 0
    %288 = vmatprep.subr.bf16.mxu0 0
    %289 = vmatpush1.bf16.msra.mxu0 0
    %290 = vmatprep.mubr.bf16.mxu0 0
    %291 = vmatmul.mubr.bf16.gmra.mrb[0].mxu0 %v253
    %v292 = vpop.f32.mrb[0].mxu0
    %v293 = vadd.f32 %v244, %v292
    %v294 = vpop.f32.mrb[0].mxu0
    %v295 = vpop.f32.mrb[0].mxu0
    %v296 = vadd.f32 %v244, %v295
    %v297 = vpop.f32.mrb[0].mxu0
    %298 = vmatprep.mubr.bf16.mxu0 0
    %299 = vmatmul.mubr.bf16.gmra.mrb[0].mxu0 %v256
    %v300 = vpop.f32.mrb[0].mxu0
    %v301 = vadd.f32 %v244, %v300
    %v302 = vpop.f32.mrb[0].mxu0
    %v303 = vpop.f32.mrb[0].mxu0
    %v304 = vpop.f32.mrb[0].mxu0
    %305 = vdwg.mxu0
    %s306 = sadd.s32 0, 0
    %s307 = smul.u32 %s306, 24
    %v308 = vlaneseq
    %v309 = vand.u32 %v308, 127
    %v310 = vstv %s307
    %v311 = vadd.s32 %v310, %v309
    %v312 = vld [vmem:[%s0] sm:$0xff]
    %313 = vset.pattern.permute.xlu0 0
    %314 = vperm.xlu0 %313, %v312
    %v315 = vpop.permute.xlu0 %314
    %vm316 = vcmp.ge.s32.totalorder %v311, %v315
    %v317 = vld [vmem:[%s1] sm:$0xff]
    %318 = vset.pattern.permute.xlu0 0
    %319 = vperm.xlu0 %318, %v317
    %v320 = vpop.permute.xlu0 %319
    %vm321 = vcmp.lt.s32.totalorder %v311, %v320
    %vm322 = vmand %vm316, %vm321
    %v323 = vsel %vm322, 1, 0
    %v324 = vcvt.s32.f32 %v323
    %vm325 = vcmask 195584
    %v327 = vsel %vm325, %v324, 0
    %329 = vmatprep.subr.mxu0 0.0
    %330 = vmatpush1.msra.mxu0 %v293
    %331 = vmatprep.subr.mxu0 0.0
    %332 = vmatpush1.msra.mxu0 %v296
    %333 = vmatprep.subr.mxu0 0.0
    %334 = vmatpush1.msra.mxu0 %v301
    %335 = vmatprep.subr.mxu0 0.0
    %336 = vmatpush1.msra.mxu0 0.0
    %337 = vmatprep.subr.mxu0 0.0
    %338 = vmatpush1.msra.mxu0 0.0
    %339 = vmatprep.subr.mxu0 0.0
    %340 = vmatpush1.msra.mxu0 0.0
    %341 = vmatprep.subr.mxu0 0.0
    %342 = vmatpush1.msra.mxu0 0.0
    %343 = vmatprep.subr.mxu0 0.0
    %344 = vmatpush1.msra.mxu0 0.0
    %345 = vmatprep.subr.mxu0 0.0
    %346 = vmatpush1.msra.mxu0 0.0
    %347 = vmatprep.subr.mxu0 0.0
    %348 = vmatpush1.msra.mxu0 0.0
    %349 = vmatprep.subr.mxu0 0.0
    %350 = vmatpush1.msra.mxu0 0.0
    %351 = vmatprep.subr.mxu0 0.0
    %352 = vmatpush1.msra.mxu0 0.0
    %353 = vmatprep.subr.mxu0 0.0
    %354 = vmatpush1.msra.mxu0 0.0
    %355 = vmatprep.subr.mxu0 0.0
    %356 = vmatpush1.msra.mxu0 0.0
    %357 = vmatprep.subr.mxu0 0.0
    %358 = vmatpush1.msra.mxu0 0.0
    %359 = vmatprep.subr.mxu0 0.0
    %360 = vmatpush1.msra.mxu0 0.0
    %361 = vmatprep.subr.mxu0 0.0
    %362 = vmatpush1.msra.mxu0 0.0
    %363 = vmatprep.subr.mxu0 0.0
    %364 = vmatpush1.msra.mxu0 0.0
    %365 = vmatprep.subr.mxu0 0.0
    %366 = vmatpush1.msra.mxu0 0.0
    %367 = vmatprep.subr.mxu0 0.0
    %368 = vmatpush1.msra.mxu0 0.0
    %369 = vmatprep.subr.mxu0 0.0
    %370 = vmatpush1.msra.mxu0 0.0
    %371 = vmatprep.subr.mxu0 0.0
    %372 = vmatpush1.msra.mxu0 0.0
    %373 = vmatprep.subr.mxu0 0.0
    %374 = vmatpush1.msra.mxu0 0.0
    %375 = vmatprep.subr.mxu0 0.0
    %376 = vmatpush1.msra.mxu0 0.0
    %377 = vmatprep.subr.mxu0 0.0
    %378 = vmatpush1.msra.mxu0 0.0
    %379 = vmatprep.subr.mxu0 0.0
    %380 = vmatpush1.msra.mxu0 0.0
    %381 = vmatprep.subr.mxu0 0.0
    %382 = vmatpush1.msra.mxu0 0.0
    %383 = vmatprep.subr.mxu0 0.0
    %384 = vmatpush1.msra.mxu0 0.0
    %385 = vmatprep.subr.mxu0 0.0
    %386 = vmatpush1.msra.mxu0 0.0
    %387 = vmatprep.subr.mxu0 0.0
    %388 = vmatpush1.msra.mxu0 0.0
    %389 = vmatprep.subr.mxu0 0.0
    %390 = vmatpush1.msra.mxu0 0.0
    %391 = vmatprep.subr.mxu0 0.0
    %392 = vmatpush1.msra.mxu0 0.0
    %393 = vmatprep.mubr.f32.mxu0 0.0
    %394 = vmatmul.mubr.f32.gmra.mrb[0].mxu0 %v327
    %v395 = vpop.f32.mrb[0].mxu0
    %v396 = vadd.f32 0.0, %v395
    %v397 = vpop.f32.mrb[0].mxu0
    %398 = vdwg.mxu0
    %v399 = vld [vmem:[#allocation2] sm:$0xff]
    %v400 = vadd.f32 %v399, %v396
    %401 = vst.msk [vmem:[#allocation2] sm:$0xff] %vm82, %v400
    // Predicated region
    $region42: #{tpu_custom_call.1} parent=1 // pred_check
      _
    $region43: #{tpu_custom_call.1} parent=1 // pred_check_branch
      %403 = sbr.rel (0) target = $region45
    $region44: #{tpu_custom_call.1} parent=1 // pred_region
      %s405 = ssub.s32 128, 128
      %406 = vsyncadd [#allocation3], %s405
      %s408 = sshll.u32 [#allocation2], 4
      %s409 = int_to_ptr.vmem [resolvable:$true] %s408
      %411 = dma.vmem_to_hbm [thread:$0]  %s409, 128, %s9, [#allocation3]
    $region45: #{tpu_custom_call.1} parent=1 // pred_fallthru
      _
    // Predicated region
    $region46: #{tpu_custom_call.1} parent=1 // pred_check
      _
    $region47: #{tpu_custom_call.1} parent=1 // pred_check_branch
      %413 = sbr.rel (0) target = $region49
    $region48: #{tpu_custom_call.1} parent=1 // pred_region
      %414 = dma.done [#allocation3], 128
    $region49: #{tpu_custom_call.1} parent=1 // pred_fallthru
      _
    %415 = vsyncpa [#allocation3], 1

</llo_original>
